<compile_context>
chip_gen: v6e
topology: v6e:2x2x1
jax: 0.10.0
libtpu: 0.0.40
codegen_flags: <defaults>
</compile_context>

<pallas_src>
import functools

import jax
import jax.numpy as jnp
from jax.experimental import pallas as pl
from jax.experimental.pallas import tpu as pltpu

# ~2 MiB per operand per grid step in f32: big enough that the ~0.35 us
# per-step pipeline overhead is negligible, small enough for every generation.
_TARGET_BLOCK_ELEMS = 512 * 1024


def _l1_kernel(pred_ref, target_ref, out_ref, *, loss_weight):
    # Upcast to f32 for the arithmetic (no-op for f32 inputs, avoids bf16
    # numerics / slow bf16 VPU path on v5e), cast back on store.
    diff = pred_ref[...].astype(jnp.float32) - target_ref[...].astype(jnp.float32)
    out_ref[...] = (loss_weight + jnp.abs(diff)).astype(out_ref.dtype)


def _pick_slab_width(total):
    """Largest lane-dense width that divides the element count (no padding)."""
    for w in (4096, 2048, 1024, 512, 256, 128):
        if total % w == 0:
            return w
    return None


def l1_loss_pallas(pred, target, loss_weight=1.0):
    """Elementwise loss_weight + |pred - target| (matches the given module)."""
    assert pred.shape == target.shape, "pred/target shape mismatch"
    orig_shape = pred.shape
    dtype = pred.dtype
    total = int(pred.size)

    width = _pick_slab_width(total)
    pad = 0
    if width is None:
        # TODO(synk): awkward element counts (not a multiple of 128) need a
        # small tail pad; this full-array pad only triggers for such sizes.
        width = 128
        padded_total = pl.cdiv(total, width) * width
        pad = padded_total - total

    pred_flat = pred.reshape(-1)
    target_flat = target.reshape(-1)
    if pad:
        pred_flat = jnp.pad(pred_flat, (0, pad))
        target_flat = jnp.pad(target_flat, (0, pad))

    pred2d = pred_flat.reshape(-1, width)
    target2d = target_flat.reshape(-1, width)
    n_rows = pred2d.shape[0]

    # Row block sized so row_block * width ~= 512K elements (2 MiB f32);
    # always a multiple of 8. If the whole slab is smaller than one block,
    # use the full slab (block_shape equal to full array dims is allowed).
    row_block = max(8, _TARGET_BLOCK_ELEMS // width)
    if row_block >= n_rows:
        row_block = n_rows
    grid = (pl.cdiv(n_rows, row_block),)

    kernel = functools.partial(_l1_kernel, loss_weight=float(loss_weight))

    out2d = pl.pallas_call(
        kernel,
        out_shape=jax.ShapeDtypeStruct((n_rows, width), dtype),
        grid_spec=pltpu.PrefetchScalarGridSpec(
            num_scalar_prefetch=0,
            grid=grid,
            in_specs=[
                pl.BlockSpec((row_block, width), lambda i: (i, 0)),
                pl.BlockSpec((row_block, width), lambda i: (i, 0)),
            ],
            out_specs=pl.BlockSpec((row_block, width), lambda i: (i, 0)),
        ),
        compiler_params=pltpu.CompilerParams(
            dimension_semantics=("parallel",),
            vmem_limit_bytes=32 * 1024 * 1024,
        ),
    )(pred2d, target2d)

    out_flat = out2d.reshape(-1)
    if pad:
        out_flat = out_flat[:total]
    return out_flat.reshape(orig_shape)


if __name__ == "__main__":
    key = jax.random.PRNGKey(0)
    k1, k2 = jax.random.split(key)

    # NCHW, small shapes: batch=2, channels=4, spatial=16
    pred = jax.random.normal(k1, (2, 4, 16, 16), dtype=jnp.float32)
    target = jax.random.normal(k2, (2, 4, 16, 16), dtype=jnp.float32)

    loss_weight = 1.0

    out = l1_loss_pallas(pred, target, loss_weight=loss_weight)
    out = jax.block_until_ready(out)

    # Pure-JAX reference check (literal module semantics: loss_weight + |diff|)
    ref = loss_weight + jnp.abs(pred - target)
    assert out.shape == pred.shape
    assert jnp.allclose(out, ref, atol=1e-6, rtol=1e-6), "mismatch vs reference"

    print("KERNEL_OK")
</pallas_src>

<mosaic_0001>
module attributes {stable_mosaic.version = 11 : i64} {
  func.func @_l1_kernel(%arg0: i32, %arg1: memref<1x2048xf32, #tpu.memory_space<vmem>>, %arg2: memref<1x2048xf32, #tpu.memory_space<vmem>>, %arg3: memref<1x2048xf32, #tpu.memory_space<vmem>>) attributes {dimension_semantics = [#tpu.dimension_semantics<parallel>], iteration_bounds = array<i64: 1>, scalar_prefetch = 0 : i64, scratch_operands = 0 : i64, tpu.core_type = #tpu.core_type<tc>, window_params = [{transform_indices = @transform_0, window_bounds = array<i64: 1, 2048>}, {transform_indices = @transform_1, window_bounds = array<i64: 1, 2048>}, {transform_indices = @transform_2, window_bounds = array<i64: 1, 2048>}]} {
    %c0 = arith.constant 0 : index
    %c0_0 = arith.constant 0 : index
    %0 = vector.load %arg1[%c0, %c0_0] : memref<1x2048xf32, #tpu.memory_space<vmem>>, vector<1x2048xf32>
    %c0_1 = arith.constant 0 : index
    %c0_2 = arith.constant 0 : index
    %1 = vector.load %arg2[%c0_1, %c0_2] : memref<1x2048xf32, #tpu.memory_space<vmem>>, vector<1x2048xf32>
    %2 = arith.subf %0, %1 : vector<1x2048xf32>
    %3 = math.absf %2 : vector<1x2048xf32>
    %cst = arith.constant 1.000000e+00 : f32
    %4 = vector.broadcast %cst : f32 to vector<1x2048xf32>
    %5 = arith.addf %4, %3 : vector<1x2048xf32>
    %c0_3 = arith.constant 0 : index
    %c0_4 = arith.constant 0 : index
    %6 = vector.load %arg3[%c0_3, %c0_4] : memref<1x2048xf32, #tpu.memory_space<vmem>>, vector<1x2048xf32>
    tpu.vector_store %arg3[%c0_3, %c0_4], %5 {strides = array<i32>} : memref<1x2048xf32, #tpu.memory_space<vmem>>, vector<1x2048xf32>,
    return
  }
  func.func @transform_0(%arg0: i32) -> (i32, i32) {
    %c0_i32 = arith.constant 0 : i32
    %c0_i32_0 = arith.constant 0 : i32
    return %arg0, %c0_i32 : i32, i32
  }
  func.func @transform_1(%arg0: i32) -> (i32, i32) {
    %c0_i32 = arith.constant 0 : i32
    %c0_i32_0 = arith.constant 0 : i32
    return %arg0, %c0_i32 : i32, i32
  }
  func.func @transform_2(%arg0: i32) -> (i32, i32) {
    %c0_i32 = arith.constant 0 : i32
    %c0_i32_0 = arith.constant 0 : i32
    return %arg0, %c0_i32 : i32, i32
  }
}

</mosaic_0001>

<llo_original>
// kernel: tpu_custom_call.1
$region0: #{tpu_custom_call.1}
  #allocation0 [shape = 'u32[]', space=smem, size = 0x4, offset = 0x4, fixed_abs, tag = 'smem constant byte address 0x4 - core index']
  #allocation1 [shape = 'u32[144,128]{1,0:T(1,128)}', space=vmem, size = 0x12000, scoped, tag = 'internal scratch']
  %s0 = inlined_call_operand.hbm [shape: f32[1,2048], index: 0, kind: input, shape index: {}]
  %s1 = inlined_call_operand.hbm [shape: f32[1,2048], index: 1, kind: input, shape index: {}]
  %s2 = inlined_call_operand.hbm [shape: f32[1,2048], index: 2, kind: output, shape index: {}]
  %s3 = sld [smem:[#allocation0]]
  $region26: #{tpu_custom_call.1} parent=0
    _
  %s5 = ssub.s32 1, %s3
  %s6 = scalar_select 0, %s5, %s3
  $region1: #{tpu_custom_call.1} parent=0
    #allocation2 [shape = 'u8[8192]{0}', space=vmem, size = 0x2000, scoped, tag = 'input window, operand 0, single buffered']
    #allocation3 [shape = 's32[1]{0}', space=sflag, size = 0x4, scoped, tag = 'scoped memory for tpu_custom_call.1']
    #allocation4 [shape = 's32[1]{0}', space=sflag, size = 0x4, scoped, tag = 'scoped memory for tpu_custom_call.1']
    #allocation5 [shape = 'u8[8192]{0}', space=vmem, size = 0x2000, scoped, tag = 'input window, operand 1, single buffered']
    #allocation6 [shape = 's32[1]{0}', space=sflag, size = 0x4, scoped, tag = 'scoped memory for tpu_custom_call.1']
    #allocation7 [shape = 'u8[8192]{0}', space=vmem, size = 0x2000, scoped, tag = 'output window, operand 0, single buffered']
    %7 = vsyncpa [#allocation3], 0
    %8 = vsyncpa [#allocation6], 0
    %9 = vsyncpa [#allocation4], 0
    // Predicated region
    $region2: #{tpu_custom_call.1} parent=1 // pred_check
      _
    $region3: #{tpu_custom_call.1} parent=1 // pred_check_branch
      %11 = sbr.rel (0) target = $region5
    $region4: #{tpu_custom_call.1} parent=1 // pred_region
      %s13 = ssub.s32 256, 256
      %14 = vsyncadd [#allocation3], %s13
      %s16 = sshll.u32 [#allocation2], 4
      %s17 = int_to_ptr.vmem [resolvable:$true] %s16
      %19 = dma.hbm_to_vmem [thread:$0]  %s0, 256, %s17, [#allocation3]
    $region5: #{tpu_custom_call.1} parent=1 // pred_fallthru
      _
    // Predicated region
    $region6: #{tpu_custom_call.1} parent=1 // pred_check
      _
    $region7: #{tpu_custom_call.1} parent=1 // pred_check_branch
      %21 = sbr.rel (0) target = $region9
    $region8: #{tpu_custom_call.1} parent=1 // pred_region
      %s23 = ssub.s32 256, 256
      %24 = vsyncadd [#allocation6], %s23
      %s26 = sshll.u32 [#allocation5], 4
      %s27 = int_to_ptr.vmem [resolvable:$true] %s26
      %29 = dma.hbm_to_vmem [thread:$0]  %s1, 256, %s27, [#allocation6]
    $region9: #{tpu_custom_call.1} parent=1 // pred_fallthru
      _
    // Predicated region
    $region10: #{tpu_custom_call.1} parent=1 // pred_check
      _
    $region11: #{tpu_custom_call.1} parent=1 // pred_check_branch
      %31 = sbr.rel (0) target = $region13
    $region12: #{tpu_custom_call.1} parent=1 // pred_region
      %32 = dma.done [#allocation3], 256
    $region13: #{tpu_custom_call.1} parent=1 // pred_fallthru
      _
    // Predicated region
    $region14: #{tpu_custom_call.1} parent=1 // pred_check
      _
    $region15: #{tpu_custom_call.1} parent=1 // pred_check_branch
      %34 = sbr.rel (0) target = $region17
    $region16: #{tpu_custom_call.1} parent=1 // pred_region
      %35 = dma.done [#allocation6], 256
    $region17: #{tpu_custom_call.1} parent=1 // pred_fallthru
      _
    %v36 = vld [vmem:[#allocation2] sm:$0xff]
    %v37 = vld [vmem:[#allocation2 + $0x8] sm:$0xff]
    %v38 = vld [vmem:[#allocation5] sm:$0xff]
    %v39 = vld [vmem:[#allocation5 + $0x8] sm:$0xff]
    %v40 = vsub.f32 %v36, %v38
    %v41 = vsub.f32 %v37, %v39
    %v42 = vand.u32 2147483647, %v40
    %v43 = vand.u32 2147483647, %v41
    %v44 = vadd.f32 %v42, 1.0
    %v45 = vadd.f32 %v43, 1.0
    %46 = vst [vmem:[#allocation7] sm:$0xff] %v44
    %47 = vst [vmem:[#allocation7 + $0x8] sm:$0xff] %v45
    // Predicated region
    $region18: #{tpu_custom_call.1} parent=1 // pred_check
      _
    $region19: #{tpu_custom_call.1} parent=1 // pred_check_branch
      %49 = sbr.rel (0) target = $region21
    $region20: #{tpu_custom_call.1} parent=1 // pred_region
      %s51 = ssub.s32 256, 256
      %52 = vsyncadd [#allocation4], %s51
      %s54 = sshll.u32 [#allocation7], 4
      %s55 = int_to_ptr.vmem [resolvable:$true] %s54
      %57 = dma.vmem_to_hbm [thread:$0]  %s55, 256, %s2, [#allocation4]
    $region21: #{tpu_custom_call.1} parent=1 // pred_fallthru
      _
    // Predicated region
    $region22: #{tpu_custom_call.1} parent=1 // pred_check
      _
    $region23: #{tpu_custom_call.1} parent=1 // pred_check_branch
      %59 = sbr.rel (0) target = $region25
    $region24: #{tpu_custom_call.1} parent=1 // pred_region
      %60 = dma.done [#allocation4], 256
    $region25: #{tpu_custom_call.1} parent=1 // pred_fallthru
      _
    %61 = vsyncpa [#allocation3], 1
    %62 = vsyncpa [#allocation6], 1
    %63 = vsyncpa [#allocation4], 1

</llo_original>
